<compile_context>
chip_gen: v7x
topology: tpu7x:2x2x1
jax: 0.10.0
libtpu: 0.0.40
codegen_flags: <defaults>
</compile_context>

<pallas_src>
import functools

import jax
import jax.numpy as jnp
from jax.experimental import pallas as pl
from jax.experimental.pallas import tpu as pltpu


def spatial_attention_kernel(x_ref, w_ref, b_ref, o_ref, xp_scr, *, C, H, W, TB):
    """Fused conv(3x3, C->1) + sigmoid + broadcast-multiply for one batch tile.

    x_ref : (TB, C, H, W)      input tile                        (VMEM)
    w_ref : (C*9,)             conv weights, row-major (C, 3, 3) (SMEM)
    b_ref : (1,)               conv bias                         (SMEM)
    o_ref : (TB, C, H, W)      output tile                       (VMEM)
    xp_scr: (TB, C, H+2, W+2)  zero-halo scratch, f32            (VMEM)
    """
    f32 = jnp.float32

    # ---- build the 1-pixel zero halo in VMEM (no wrapper pad, no HBM round-trip).
    # Border is re-zeroed every step (2 rows + 2 cols, cheap) -> correct even when the
    # parallel grid axis is split across TensorCores and program_id(0)==0 never runs
    # on the second core.
    xp_scr[:, :, 0:1, :] = jnp.zeros((TB, C, 1, W + 2), f32)
    xp_scr[:, :, H + 1:H + 2, :] = jnp.zeros((TB, C, 1, W + 2), f32)
    xp_scr[:, :, :, 0:1] = jnp.zeros((TB, C, H + 2, 1), f32)
    xp_scr[:, :, :, W + 1:W + 2] = jnp.zeros((TB, C, H + 2, 1), f32)

    xin = x_ref[...].astype(f32)                         # (TB, C, H, W)
    xp_scr[:, :, 1:H + 1, 1:W + 1] = xin                 # interior fill

    # ---- 3x3 conv, C input channels -> 1 output channel.
    # Per tap (dh, dw): channel-weighted sum over full padded planes (VPU), then ONE
    # unaligned spatial slice (XLU) -> 9 slices total instead of 9*C.
    acc = jnp.zeros((TB, H, W), f32) + b_ref[0]
    for dh in range(3):
        for dw in range(3):
            tap = dh * 3 + dw
            red = xp_scr[:, 0, :, :] * w_ref[tap]        # (TB, H+2, W+2)
            for c in range(1, C):
                red = red + xp_scr[:, c, :, :] * w_ref[c * 9 + tap]
            acc = acc + red[:, dh:dh + H, dw:dw + W]

    # ---- sigmoid: exp and approx reciprocal both run on the EUP (idle slot here).
    attn = pl.reciprocal(1.0 + jnp.exp(-acc), approx=True)   # (TB, H, W)

    # ---- broadcast multiply + store in the output dtype.
    o_ref[...] = (xin * attn[:, None, :, :]).astype(o_ref.dtype)


def _pick_block_batch(B, per_image_bytes, target_bytes=512 * 1024):
    """Largest divisor of B with <= target bytes per step, keeping >= 2 grid steps."""
    best = 1
    for cand in range(1, B + 1):
        if B % cand:
            continue
        if cand * per_image_bytes > target_bytes:
            break
        if B // cand >= 2 or B == 1:
            best = cand
    return best


def spatial_attention(x, weight, bias, *, block_batch=None):
    """x: (B, C, H, W); weight: (C, 3, 3) (PyTorch (1, C, 3, 3) squeezed); bias: (1,)."""
    B, C, H, W = x.shape
    # w_flat[c*9 + dh*3 + dw] == weight[c, dh, dw]  (row-major, matches kernel indexing)
    w_flat = weight.reshape(C * 9).astype(jnp.float32)
    b_flat = bias.reshape(1).astype(jnp.float32)

    itemsize = jnp.dtype(x.dtype).itemsize
    per_image = C * H * W * itemsize
    tb = block_batch if block_batch is not None else _pick_block_batch(B, per_image)
    assert B % tb == 0, "block_batch must divide B"
    grid = (B // tb,)

    # VMEM budget: double-buffered input + output blocks, plus the halo scratch.
    block_bytes = tb * per_image
    scratch_bytes = tb * C * (H + 2) * (W + 2) * 4
    vmem_limit = 2 * 2 * block_bytes + scratch_bytes + (4 << 20)     # + headroom
    vmem_limit = int(min(max(vmem_limit, 16 << 20), 48 << 20))       # v7x-safe cap

    kernel = functools.partial(spatial_attention_kernel, C=C, H=H, W=W, TB=tb)

    return pl.pallas_call(
        kernel,
        out_shape=jax.ShapeDtypeStruct((B, C, H, W), x.dtype),
        grid=grid,
        in_specs=[
            # single input read: one (tb, C, H, W) tile per grid step
            pl.BlockSpec((tb, C, H, W), lambda b: (b, 0, 0, 0)),
            # conv weights + bias: tiny scalar tables -> SMEM, untiled
            pl.BlockSpec(memory_space=pltpu.MemorySpace.SMEM),
            pl.BlockSpec(memory_space=pltpu.MemorySpace.SMEM),
        ],
        out_specs=pl.BlockSpec((tb, C, H, W), lambda b: (b, 0, 0, 0)),
        scratch_shapes=[pltpu.VMEM((tb, C, H + 2, W + 2), jnp.float32)],
        compiler_params=pltpu.CompilerParams(
            dimension_semantics=("parallel",),
            vmem_limit_bytes=vmem_limit,
        ),
    )(x, w_flat, b_flat)


# -------------------- pure-JAX reference for validation --------------------
def spatial_attention_ref(x, weight, bias):
    conv = jax.lax.conv_general_dilated(
        x, weight[None],                       # (1, C, 3, 3)
        window_strides=(1, 1), padding="SAME",
        dimension_numbers=("NCHW", "OIHW", "NCHW"),
    ) + bias.reshape(1, 1, 1, 1)
    attn = 1.0 / (1.0 + jnp.exp(-conv))
    return x * attn


if __name__ == "__main__":
    B, C, H, W = 2, 4, 16, 16

    key = jax.random.PRNGKey(0)
    kx, kw, kb = jax.random.split(key, 3)
    x = jax.random.normal(kx, (B, C, H, W), jnp.float32)
    weight = 0.1 * jax.random.normal(kw, (C, 3, 3), jnp.float32)   # Conv2d(C, 1, 3) weight
    bias = 0.1 * jax.random.normal(kb, (1,), jnp.float32)          # Conv2d bias

    out = spatial_attention(x, weight, bias)
    out = jax.block_until_ready(out)

    ref = spatial_attention_ref(x, weight, bias)
    # slightly relaxed tolerance: sigmoid uses the EUP approx reciprocal
    assert jnp.allclose(out, ref, atol=3e-3, rtol=3e-3), "mismatch vs reference"

    print("KERNEL_OK")
</pallas_src>

<mosaic_0001>
module attributes {stable_mosaic.version = 11 : i64} {
  func.func @spatial_attention_kernel(%arg0: i32, %arg1: memref<1x4x16x16xf32, #tpu.memory_space<vmem>>, %arg2: memref<36xf32, #tpu.memory_space<smem>>, %arg3: memref<1xf32, #tpu.memory_space<smem>>, %arg4: memref<1x4x16x16xf32, #tpu.memory_space<vmem>>, %arg5: memref<1x4x18x18xf32, #tpu.memory_space<vmem>>) attributes {dimension_semantics = [#tpu.dimension_semantics<parallel>], iteration_bounds = array<i64: 2>, scalar_prefetch = 0 : i64, scratch_operands = 1 : i64, tpu.core_type = #tpu.core_type<tc>, window_params = [{transform_indices = @transform_0, window_bounds = array<i64: 1, 4, 16, 16>}, {transform_indices = @transform_1, window_bounds = array<i64: 36>}, {transform_indices = @transform_2, window_bounds = array<i64: 1>}, {transform_indices = @transform_3, window_bounds = array<i64: 1, 4, 16, 16>}]} {
    %cst = arith.constant 0.000000e+00 : f32
    %0 = vector.broadcast %cst : f32 to vector<1x4x1x18xf32>
    %c0 = arith.constant 0 : index
    %c0_0 = arith.constant 0 : index
    %c0_1 = arith.constant 0 : index
    %c0_2 = arith.constant 0 : index
    %1 = vector.load %arg5[%c0, %c0_0, %c0_1, %c0_2] : memref<1x4x18x18xf32, #tpu.memory_space<vmem>>, vector<1x4x1x18xf32>
    tpu.vector_store %arg5[%c0, %c0_0, %c0_1, %c0_2], %0 {strides = array<i32>} : memref<1x4x18x18xf32, #tpu.memory_space<vmem>>, vector<1x4x1x18xf32>,
    %cst_3 = arith.constant 0.000000e+00 : f32
    %2 = vector.broadcast %cst_3 : f32 to vector<1x4x1x18xf32>
    %c0_4 = arith.constant 0 : index
    %c0_5 = arith.constant 0 : index
    %c17 = arith.constant 17 : index
    %c0_6 = arith.constant 0 : index
    %3 = vector.load %arg5[%c0_4, %c0_5, %c17, %c0_6] : memref<1x4x18x18xf32, #tpu.memory_space<vmem>>, vector<1x4x1x18xf32>
    tpu.vector_store %arg5[%c0_4, %c0_5, %c17, %c0_6], %2 {strides = array<i32>} : memref<1x4x18x18xf32, #tpu.memory_space<vmem>>, vector<1x4x1x18xf32>,
    %cst_7 = arith.constant 0.000000e+00 : f32
    %4 = vector.broadcast %cst_7 : f32 to vector<1x4x18x1xf32>
    %c0_8 = arith.constant 0 : index
    %c0_9 = arith.constant 0 : index
    %c0_10 = arith.constant 0 : index
    %c0_11 = arith.constant 0 : index
    %5 = vector.load %arg5[%c0_8, %c0_9, %c0_10, %c0_11] : memref<1x4x18x18xf32, #tpu.memory_space<vmem>>, vector<1x4x18x1xf32>
    tpu.vector_store %arg5[%c0_8, %c0_9, %c0_10, %c0_11], %4 {strides = array<i32>} : memref<1x4x18x18xf32, #tpu.memory_space<vmem>>, vector<1x4x18x1xf32>,
    %cst_12 = arith.constant 0.000000e+00 : f32
    %6 = vector.broadcast %cst_12 : f32 to vector<1x4x18x1xf32>
    %c0_13 = arith.constant 0 : index
    %c0_14 = arith.constant 0 : index
    %c0_15 = arith.constant 0 : index
    %c17_16 = arith.constant 17 : index
    %7 = vector.load %arg5[%c0_13, %c0_14, %c0_15, %c17_16] : memref<1x4x18x18xf32, #tpu.memory_space<vmem>>, vector<1x4x18x1xf32>
    tpu.vector_store %arg5[%c0_13, %c0_14, %c0_15, %c17_16], %6 {strides = array<i32>} : memref<1x4x18x18xf32, #tpu.memory_space<vmem>>, vector<1x4x18x1xf32>,
    %c0_17 = arith.constant 0 : index
    %c0_18 = arith.constant 0 : index
    %c0_19 = arith.constant 0 : index
    %c0_20 = arith.constant 0 : index
    %8 = vector.load %arg1[%c0_17, %c0_18, %c0_19, %c0_20] : memref<1x4x16x16xf32, #tpu.memory_space<vmem>>, vector<1x4x16x16xf32>
    %c0_21 = arith.constant 0 : index
    %c0_22 = arith.constant 0 : index
    %c1 = arith.constant 1 : index
    %c1_23 = arith.constant 1 : index
    %9 = vector.load %arg5[%c0_21, %c0_22, %c1, %c1_23] : memref<1x4x18x18xf32, #tpu.memory_space<vmem>>, vector<1x4x16x16xf32>
    tpu.vector_store %arg5[%c0_21, %c0_22, %c1, %c1_23], %8 {strides = array<i32>} : memref<1x4x18x18xf32, #tpu.memory_space<vmem>>, vector<1x4x16x16xf32>,
    %cst_24 = arith.constant 0.000000e+00 : f32
    %10 = vector.broadcast %cst_24 : f32 to vector<1x16x16xf32>
    %c0_25 = arith.constant 0 : index
    %11 = memref.load %arg3[%c0_25] : memref<1xf32, #tpu.memory_space<smem>>
    %12 = vector.broadcast %11 : f32 to vector<1x16x16xf32>
    %13 = arith.addf %10, %12 : vector<1x16x16xf32>
    %c0_26 = arith.constant 0 : index
    %c0_27 = arith.constant 0 : index
    %c0_28 = arith.constant 0 : index
    %c0_29 = arith.constant 0 : index
    %14 = vector.load %arg5[%c0_26, %c0_27, %c0_28, %c0_29] : memref<1x4x18x18xf32, #tpu.memory_space<vmem>>, vector<1x1x18x18xf32>
    %15 = vector.shape_cast %14 : vector<1x1x18x18xf32> to vector<1x18x18xf32>
    %c0_30 = arith.constant 0 : index
    %16 = memref.load %arg2[%c0_30] : memref<36xf32, #tpu.memory_space<smem>>
    %17 = vector.broadcast %16 : f32 to vector<1x18x18xf32>
    %18 = arith.mulf %15, %17 : vector<1x18x18xf32>
    %c0_31 = arith.constant 0 : index
    %c1_32 = arith.constant 1 : index
    %c0_33 = arith.constant 0 : index
    %c0_34 = arith.constant 0 : index
    %19 = vector.load %arg5[%c0_31, %c1_32, %c0_33, %c0_34] : memref<1x4x18x18xf32, #tpu.memory_space<vmem>>, vector<1x1x18x18xf32>
    %20 = vector.shape_cast %19 : vector<1x1x18x18xf32> to vector<1x18x18xf32>
    %c9 = arith.constant 9 : index
    %21 = memref.load %arg2[%c9] : memref<36xf32, #tpu.memory_space<smem>>
    %22 = vector.broadcast %21 : f32 to vector<1x18x18xf32>
    %23 = arith.mulf %20, %22 : vector<1x18x18xf32>
    %24 = arith.addf %18, %23 : vector<1x18x18xf32>
    %c0_35 = arith.constant 0 : index
    %c2 = arith.constant 2 : index
    %c0_36 = arith.constant 0 : index
    %c0_37 = arith.constant 0 : index
    %25 = vector.load %arg5[%c0_35, %c2, %c0_36, %c0_37] : memref<1x4x18x18xf32, #tpu.memory_space<vmem>>, vector<1x1x18x18xf32>
    %26 = vector.shape_cast %25 : vector<1x1x18x18xf32> to vector<1x18x18xf32>
    %c18 = arith.constant 18 : index
    %27 = memref.load %arg2[%c18] : memref<36xf32, #tpu.memory_space<smem>>
    %28 = vector.broadcast %27 : f32 to vector<1x18x18xf32>
    %29 = arith.mulf %26, %28 : vector<1x18x18xf32>
    %30 = arith.addf %24, %29 : vector<1x18x18xf32>
    %c0_38 = arith.constant 0 : index
    %c3 = arith.constant 3 : index
    %c0_39 = arith.constant 0 : index
    %c0_40 = arith.constant 0 : index
    %31 = vector.load %arg5[%c0_38, %c3, %c0_39, %c0_40] : memref<1x4x18x18xf32, #tpu.memory_space<vmem>>, vector<1x1x18x18xf32>
    %32 = vector.shape_cast %31 : vector<1x1x18x18xf32> to vector<1x18x18xf32>
    %c27 = arith.constant 27 : index
    %33 = memref.load %arg2[%c27] : memref<36xf32, #tpu.memory_space<smem>>
    %34 = vector.broadcast %33 : f32 to vector<1x18x18xf32>
    %35 = arith.mulf %32, %34 : vector<1x18x18xf32>
    %36 = arith.addf %30, %35 : vector<1x18x18xf32>
    %37 = vector.extract_strided_slice %36 {offsets = [0, 0, 0], sizes = [1, 16, 16], strides = [1, 1, 1]} : vector<1x18x18xf32> to vector<1x16x16xf32>
    %38 = arith.addf %13, %37 : vector<1x16x16xf32>
    %c0_41 = arith.constant 0 : index
    %c0_42 = arith.constant 0 : index
    %c0_43 = arith.constant 0 : index
    %c0_44 = arith.constant 0 : index
    %39 = vector.load %arg5[%c0_41, %c0_42, %c0_43, %c0_44] : memref<1x4x18x18xf32, #tpu.memory_space<vmem>>, vector<1x1x18x18xf32>
    %40 = vector.shape_cast %39 : vector<1x1x18x18xf32> to vector<1x18x18xf32>
    %c1_45 = arith.constant 1 : index
    %41 = memref.load %arg2[%c1_45] : memref<36xf32, #tpu.memory_space<smem>>
    %42 = vector.broadcast %41 : f32 to vector<1x18x18xf32>
    %43 = arith.mulf %40, %42 : vector<1x18x18xf32>
    %c0_46 = arith.constant 0 : index
    %c1_47 = arith.constant 1 : index
    %c0_48 = arith.constant 0 : index
    %c0_49 = arith.constant 0 : index
    %44 = vector.load %arg5[%c0_46, %c1_47, %c0_48, %c0_49] : memref<1x4x18x18xf32, #tpu.memory_space<vmem>>, vector<1x1x18x18xf32>
    %45 = vector.shape_cast %44 : vector<1x1x18x18xf32> to vector<1x18x18xf32>
    %c10 = arith.constant 10 : index
    %46 = memref.load %arg2[%c10] : memref<36xf32, #tpu.memory_space<smem>>
    %47 = vector.broadcast %46 : f32 to vector<1x18x18xf32>
    %48 = arith.mulf %45, %47 : vector<1x18x18xf32>
    %49 = arith.addf %43, %48 : vector<1x18x18xf32>
    %c0_50 = arith.constant 0 : index
    %c2_51 = arith.constant 2 : index
    %c0_52 = arith.constant 0 : index
    %c0_53 = arith.constant 0 : index
    %50 = vector.load %arg5[%c0_50, %c2_51, %c0_52, %c0_53] : memref<1x4x18x18xf32, #tpu.memory_space<vmem>>, vector<1x1x18x18xf32>
    %51 = vector.shape_cast %50 : vector<1x1x18x18xf32> to vector<1x18x18xf32>
    %c19 = arith.constant 19 : index
    %52 = memref.load %arg2[%c19] : memref<36xf32, #tpu.memory_space<smem>>
    %53 = vector.broadcast %52 : f32 to vector<1x18x18xf32>
    %54 = arith.mulf %51, %53 : vector<1x18x18xf32>
    %55 = arith.addf %49, %54 : vector<1x18x18xf32>
    %c0_54 = arith.constant 0 : index
    %c3_55 = arith.constant 3 : index
    %c0_56 = arith.constant 0 : index
    %c0_57 = arith.constant 0 : index
    %56 = vector.load %arg5[%c0_54, %c3_55, %c0_56, %c0_57] : memref<1x4x18x18xf32, #tpu.memory_space<vmem>>, vector<1x1x18x18xf32>
    %57 = vector.shape_cast %56 : vector<1x1x18x18xf32> to vector<1x18x18xf32>
    %c28 = arith.constant 28 : index
    %58 = memref.load %arg2[%c28] : memref<36xf32, #tpu.memory_space<smem>>
    %59 = vector.broadcast %58 : f32 to vector<1x18x18xf32>
    %60 = arith.mulf %57, %59 : vector<1x18x18xf32>
    %61 = arith.addf %55, %60 : vector<1x18x18xf32>
    %62 = vector.extract_strided_slice %61 {offsets = [0, 0, 1], sizes = [1, 16, 16], strides = [1, 1, 1]} : vector<1x18x18xf32> to vector<1x16x16xf32>
    %63 = arith.addf %38, %62 : vector<1x16x16xf32>
    %c0_58 = arith.constant 0 : index
    %c0_59 = arith.constant 0 : index
    %c0_60 = arith.constant 0 : index
    %c0_61 = arith.constant 0 : index
    %64 = vector.load %arg5[%c0_58, %c0_59, %c0_60, %c0_61] : memref<1x4x18x18xf32, #tpu.memory_space<vmem>>, vector<1x1x18x18xf32>
    %65 = vector.shape_cast %64 : vector<1x1x18x18xf32> to vector<1x18x18xf32>
    %c2_62 = arith.constant 2 : index
    %66 = memref.load %arg2[%c2_62] : memref<36xf32, #tpu.memory_space<smem>>
    %67 = vector.broadcast %66 : f32 to vector<1x18x18xf32>
    %68 = arith.mulf %65, %67 : vector<1x18x18xf32>
    %c0_63 = arith.constant 0 : index
    %c1_64 = arith.constant 1 : index
    %c0_65 = arith.constant 0 : index
    %c0_66 = arith.constant 0 : index
    %69 = vector.load %arg5[%c0_63, %c1_64, %c0_65, %c0_66] : memref<1x4x18x18xf32, #tpu.memory_space<vmem>>, vector<1x1x18x18xf32>
    %70 = vector.shape_cast %69 : vector<1x1x18x18xf32> to vector<1x18x18xf32>
    %c11 = arith.constant 11 : index
    %71 = memref.load %arg2[%c11] : memref<36xf32, #tpu.memory_space<smem>>
    %72 = vector.broadcast %71 : f32 to vector<1x18x18xf32>
    %73 = arith.mulf %70, %72 : vector<1x18x18xf32>
    %74 = arith.addf %68, %73 : vector<1x18x18xf32>
    %c0_67 = arith.constant 0 : index
    %c2_68 = arith.constant 2 : index
    %c0_69 = arith.constant 0 : index
    %c0_70 = arith.constant 0 : index
    %75 = vector.load %arg5[%c0_67, %c2_68, %c0_69, %c0_70] : memref<1x4x18x18xf32, #tpu.memory_space<vmem>>, vector<1x1x18x18xf32>
    %76 = vector.shape_cast %75 : vector<1x1x18x18xf32> to vector<1x18x18xf32>
    %c20 = arith.constant 20 : index
    %77 = memref.load %arg2[%c20] : memref<36xf32, #tpu.memory_space<smem>>
    %78 = vector.broadcast %77 : f32 to vector<1x18x18xf32>
    %79 = arith.mulf %76, %78 : vector<1x18x18xf32>
    %80 = arith.addf %74, %79 : vector<1x18x18xf32>
    %c0_71 = arith.constant 0 : index
    %c3_72 = arith.constant 3 : index
    %c0_73 = arith.constant 0 : index
    %c0_74 = arith.constant 0 : index
    %81 = vector.load %arg5[%c0_71, %c3_72, %c0_73, %c0_74] : memref<1x4x18x18xf32, #tpu.memory_space<vmem>>, vector<1x1x18x18xf32>
    %82 = vector.shape_cast %81 : vector<1x1x18x18xf32> to vector<1x18x18xf32>
    %c29 = arith.constant 29 : index
    %83 = memref.load %arg2[%c29] : memref<36xf32, #tpu.memory_space<smem>>
    %84 = vector.broadcast %83 : f32 to vector<1x18x18xf32>
    %85 = arith.mulf %82, %84 : vector<1x18x18xf32>
    %86 = arith.addf %80, %85 : vector<1x18x18xf32>
    %87 = vector.extract_strided_slice %86 {offsets = [0, 0, 2], sizes = [1, 16, 16], strides = [1, 1, 1]} : vector<1x18x18xf32> to vector<1x16x16xf32>
    %88 = arith.addf %63, %87 : vector<1x16x16xf32>
    %c0_75 = arith.constant 0 : index
    %c0_76 = arith.constant 0 : index
    %c0_77 = arith.constant 0 : index
    %c0_78 = arith.constant 0 : index
    %89 = vector.load %arg5[%c0_75, %c0_76, %c0_77, %c0_78] : memref<1x4x18x18xf32, #tpu.memory_space<vmem>>, vector<1x1x18x18xf32>
    %90 = vector.shape_cast %89 : vector<1x1x18x18xf32> to vector<1x18x18xf32>
    %c3_79 = arith.constant 3 : index
    %91 = memref.load %arg2[%c3_79] : memref<36xf32, #tpu.memory_space<smem>>
    %92 = vector.broadcast %91 : f32 to vector<1x18x18xf32>
    %93 = arith.mulf %90, %92 : vector<1x18x18xf32>
    %c0_80 = arith.constant 0 : index
    %c1_81 = arith.constant 1 : index
    %c0_82 = arith.constant 0 : index
    %c0_83 = arith.constant 0 : index
    %94 = vector.load %arg5[%c0_80, %c1_81, %c0_82, %c0_83] : memref<1x4x18x18xf32, #tpu.memory_space<vmem>>, vector<1x1x18x18xf32>
    %95 = vector.shape_cast %94 : vector<1x1x18x18xf32> to vector<1x18x18xf32>
    %c12 = arith.constant 12 : index
    %96 = memref.load %arg2[%c12] : memref<36xf32, #tpu.memory_space<smem>>
    %97 = vector.broadcast %96 : f32 to vector<1x18x18xf32>
    %98 = arith.mulf %95, %97 : vector<1x18x18xf32>
    %99 = arith.addf %93, %98 : vector<1x18x18xf32>
    %c0_84 = arith.constant 0 : index
    %c2_85 = arith.constant 2 : index
    %c0_86 = arith.constant 0 : index
    %c0_87 = arith.constant 0 : index
    %100 = vector.load %arg5[%c0_84, %c2_85, %c0_86, %c0_87] : memref<1x4x18x18xf32, #tpu.memory_space<vmem>>, vector<1x1x18x18xf32>
    %101 = vector.shape_cast %100 : vector<1x1x18x18xf32> to vector<1x18x18xf32>
    %c21 = arith.constant 21 : index
    %102 = memref.load %arg2[%c21] : memref<36xf32, #tpu.memory_space<smem>>
    %103 = vector.broadcast %102 : f32 to vector<1x18x18xf32>
    %104 = arith.mulf %101, %103 : vector<1x18x18xf32>
    %105 = arith.addf %99, %104 : vector<1x18x18xf32>
    %c0_88 = arith.constant 0 : index
    %c3_89 = arith.constant 3 : index
    %c0_90 = arith.constant 0 : index
    %c0_91 = arith.constant 0 : index
    %106 = vector.load %arg5[%c0_88, %c3_89, %c0_90, %c0_91] : memref<1x4x18x18xf32, #tpu.memory_space<vmem>>, vector<1x1x18x18xf32>
    %107 = vector.shape_cast %106 : vector<1x1x18x18xf32> to vector<1x18x18xf32>
    %c30 = arith.constant 30 : index
    %108 = memref.load %arg2[%c30] : memref<36xf32, #tpu.memory_space<smem>>
    %109 = vector.broadcast %108 : f32 to vector<1x18x18xf32>
    %110 = arith.mulf %107, %109 : vector<1x18x18xf32>
    %111 = arith.addf %105, %110 : vector<1x18x18xf32>
    %112 = vector.extract_strided_slice %111 {offsets = [0, 1, 0], sizes = [1, 16, 16], strides = [1, 1, 1]} : vector<1x18x18xf32> to vector<1x16x16xf32>
    %113 = arith.addf %88, %112 : vector<1x16x16xf32>
    %c0_92 = arith.constant 0 : index
    %c0_93 = arith.constant 0 : index
    %c0_94 = arith.constant 0 : index
    %c0_95 = arith.constant 0 : index
    %114 = vector.load %arg5[%c0_92, %c0_93, %c0_94, %c0_95] : memref<1x4x18x18xf32, #tpu.memory_space<vmem>>, vector<1x1x18x18xf32>
    %115 = vector.shape_cast %114 : vector<1x1x18x18xf32> to vector<1x18x18xf32>
    %c4 = arith.constant 4 : index
    %116 = memref.load %arg2[%c4] : memref<36xf32, #tpu.memory_space<smem>>
    %117 = vector.broadcast %116 : f32 to vector<1x18x18xf32>
    %118 = arith.mulf %115, %117 : vector<1x18x18xf32>
    %c0_96 = arith.constant 0 : index
    %c1_97 = arith.constant 1 : index
    %c0_98 = arith.constant 0 : index
    %c0_99 = arith.constant 0 : index
    %119 = vector.load %arg5[%c0_96, %c1_97, %c0_98, %c0_99] : memref<1x4x18x18xf32, #tpu.memory_space<vmem>>, vector<1x1x18x18xf32>
    %120 = vector.shape_cast %119 : vector<1x1x18x18xf32> to vector<1x18x18xf32>
    %c13 = arith.constant 13 : index
    %121 = memref.load %arg2[%c13] : memref<36xf32, #tpu.memory_space<smem>>
    %122 = vector.broadcast %121 : f32 to vector<1x18x18xf32>
    %123 = arith.mulf %120, %122 : vector<1x18x18xf32>
    %124 = arith.addf %118, %123 : vector<1x18x18xf32>
    %c0_100 = arith.constant 0 : index
    %c2_101 = arith.constant 2 : index
    %c0_102 = arith.constant 0 : index
    %c0_103 = arith.constant 0 : index
    %125 = vector.load %arg5[%c0_100, %c2_101, %c0_102, %c0_103] : memref<1x4x18x18xf32, #tpu.memory_space<vmem>>, vector<1x1x18x18xf32>
    %126 = vector.shape_cast %125 : vector<1x1x18x18xf32> to vector<1x18x18xf32>
    %c22 = arith.constant 22 : index
    %127 = memref.load %arg2[%c22] : memref<36xf32, #tpu.memory_space<smem>>
    %128 = vector.broadcast %127 : f32 to vector<1x18x18xf32>
    %129 = arith.mulf %126, %128 : vector<1x18x18xf32>
    %130 = arith.addf %124, %129 : vector<1x18x18xf32>
    %c0_104 = arith.constant 0 : index
    %c3_105 = arith.constant 3 : index
    %c0_106 = arith.constant 0 : index
    %c0_107 = arith.constant 0 : index
    %131 = vector.load %arg5[%c0_104, %c3_105, %c0_106, %c0_107] : memref<1x4x18x18xf32, #tpu.memory_space<vmem>>, vector<1x1x18x18xf32>
    %132 = vector.shape_cast %131 : vector<1x1x18x18xf32> to vector<1x18x18xf32>
    %c31 = arith.constant 31 : index
    %133 = memref.load %arg2[%c31] : memref<36xf32, #tpu.memory_space<smem>>
    %134 = vector.broadcast %133 : f32 to vector<1x18x18xf32>
    %135 = arith.mulf %132, %134 : vector<1x18x18xf32>
    %136 = arith.addf %130, %135 : vector<1x18x18xf32>
    %137 = vector.extract_strided_slice %136 {offsets = [0, 1, 1], sizes = [1, 16, 16], strides = [1, 1, 1]} : vector<1x18x18xf32> to vector<1x16x16xf32>
    %138 = arith.addf %113, %137 : vector<1x16x16xf32>
    %c0_108 = arith.constant 0 : index
    %c0_109 = arith.constant 0 : index
    %c0_110 = arith.constant 0 : index
    %c0_111 = arith.constant 0 : index
    %139 = vector.load %arg5[%c0_108, %c0_109, %c0_110, %c0_111] : memref<1x4x18x18xf32, #tpu.memory_space<vmem>>, vector<1x1x18x18xf32>
    %140 = vector.shape_cast %139 : vector<1x1x18x18xf32> to vector<1x18x18xf32>
    %c5 = arith.constant 5 : index
    %141 = memref.load %arg2[%c5] : memref<36xf32, #tpu.memory_space<smem>>
    %142 = vector.broadcast %141 : f32 to vector<1x18x18xf32>
    %143 = arith.mulf %140, %142 : vector<1x18x18xf32>
    %c0_112 = arith.constant 0 : index
    %c1_113 = arith.constant 1 : index
    %c0_114 = arith.constant 0 : index
    %c0_115 = arith.constant 0 : index
    %144 = vector.load %arg5[%c0_112, %c1_113, %c0_114, %c0_115] : memref<1x4x18x18xf32, #tpu.memory_space<vmem>>, vector<1x1x18x18xf32>
    %145 = vector.shape_cast %144 : vector<1x1x18x18xf32> to vector<1x18x18xf32>
    %c14 = arith.constant 14 : index
    %146 = memref.load %arg2[%c14] : memref<36xf32, #tpu.memory_space<smem>>
    %147 = vector.broadcast %146 : f32 to vector<1x18x18xf32>
    %148 = arith.mulf %145, %147 : vector<1x18x18xf32>
    %149 = arith.addf %143, %148 : vector<1x18x18xf32>
    %c0_116 = arith.constant 0 : index
    %c2_117 = arith.constant 2 : index
    %c0_118 = arith.constant 0 : index
    %c0_119 = arith.constant 0 : index
    %150 = vector.load %arg5[%c0_116, %c2_117, %c0_118, %c0_119] : memref<1x4x18x18xf32, #tpu.memory_space<vmem>>, vector<1x1x18x18xf32>
    %151 = vector.shape_cast %150 : vector<1x1x18x18xf32> to vector<1x18x18xf32>
    %c23 = arith.constant 23 : index
    %152 = memref.load %arg2[%c23] : memref<36xf32, #tpu.memory_space<smem>>
    %153 = vector.broadcast %152 : f32 to vector<1x18x18xf32>
    %154 = arith.mulf %151, %153 : vector<1x18x18xf32>
    %155 = arith.addf %149, %154 : vector<1x18x18xf32>
    %c0_120 = arith.constant 0 : index
    %c3_121 = arith.constant 3 : index
    %c0_122 = arith.constant 0 : index
    %c0_123 = arith.constant 0 : index
    %156 = vector.load %arg5[%c0_120, %c3_121, %c0_122, %c0_123] : memref<1x4x18x18xf32, #tpu.memory_space<vmem>>, vector<1x1x18x18xf32>
    %157 = vector.shape_cast %156 : vector<1x1x18x18xf32> to vector<1x18x18xf32>
    %c32 = arith.constant 32 : index
    %158 = memref.load %arg2[%c32] : memref<36xf32, #tpu.memory_space<smem>>
    %159 = vector.broadcast %158 : f32 to vector<1x18x18xf32>
    %160 = arith.mulf %157, %159 : vector<1x18x18xf32>
    %161 = arith.addf %155, %160 : vector<1x18x18xf32>
    %162 = vector.extract_strided_slice %161 {offsets = [0, 1, 2], sizes = [1, 16, 16], strides = [1, 1, 1]} : vector<1x18x18xf32> to vector<1x16x16xf32>
    %163 = arith.addf %138, %162 : vector<1x16x16xf32>
    %c0_124 = arith.constant 0 : index
    %c0_125 = arith.constant 0 : index
    %c0_126 = arith.constant 0 : index
    %c0_127 = arith.constant 0 : index
    %164 = vector.load %arg5[%c0_124, %c0_125, %c0_126, %c0_127] : memref<1x4x18x18xf32, #tpu.memory_space<vmem>>, vector<1x1x18x18xf32>
    %165 = vector.shape_cast %164 : vector<1x1x18x18xf32> to vector<1x18x18xf32>
    %c6 = arith.constant 6 : index
    %166 = memref.load %arg2[%c6] : memref<36xf32, #tpu.memory_space<smem>>
    %167 = vector.broadcast %166 : f32 to vector<1x18x18xf32>
    %168 = arith.mulf %165, %167 : vector<1x18x18xf32>
    %c0_128 = arith.constant 0 : index
    %c1_129 = arith.constant 1 : index
    %c0_130 = arith.constant 0 : index
    %c0_131 = arith.constant 0 : index
    %169 = vector.load %arg5[%c0_128, %c1_129, %c0_130, %c0_131] : memref<1x4x18x18xf32, #tpu.memory_space<vmem>>, vector<1x1x18x18xf32>
    %170 = vector.shape_cast %169 : vector<1x1x18x18xf32> to vector<1x18x18xf32>
    %c15 = arith.constant 15 : index
    %171 = memref.load %arg2[%c15] : memref<36xf32, #tpu.memory_space<smem>>
    %172 = vector.broadcast %171 : f32 to vector<1x18x18xf32>
    %173 = arith.mulf %170, %172 : vector<1x18x18xf32>
    %174 = arith.addf %168, %173 : vector<1x18x18xf32>
    %c0_132 = arith.constant 0 : index
    %c2_133 = arith.constant 2 : index
    %c0_134 = arith.constant 0 : index
    %c0_135 = arith.constant 0 : index
    %175 = vector.load %arg5[%c0_132, %c2_133, %c0_134, %c0_135] : memref<1x4x18x18xf32, #tpu.memory_space<vmem>>, vector<1x1x18x18xf32>
    %176 = vector.shape_cast %175 : vector<1x1x18x18xf32> to vector<1x18x18xf32>
    %c24 = arith.constant 24 : index
    %177 = memref.load %arg2[%c24] : memref<36xf32, #tpu.memory_space<smem>>
    %178 = vector.broadcast %177 : f32 to vector<1x18x18xf32>
    %179 = arith.mulf %176, %178 : vector<1x18x18xf32>
    %180 = arith.addf %174, %179 : vector<1x18x18xf32>
    %c0_136 = arith.constant 0 : index
    %c3_137 = arith.constant 3 : index
    %c0_138 = arith.constant 0 : index
    %c0_139 = arith.constant 0 : index
    %181 = vector.load %arg5[%c0_136, %c3_137, %c0_138, %c0_139] : memref<1x4x18x18xf32, #tpu.memory_space<vmem>>, vector<1x1x18x18xf32>
    %182 = vector.shape_cast %181 : vector<1x1x18x18xf32> to vector<1x18x18xf32>
    %c33 = arith.constant 33 : index
    %183 = memref.load %arg2[%c33] : memref<36xf32, #tpu.memory_space<smem>>
    %184 = vector.broadcast %183 : f32 to vector<1x18x18xf32>
    %185 = arith.mulf %182, %184 : vector<1x18x18xf32>
    %186 = arith.addf %180, %185 : vector<1x18x18xf32>
    %187 = vector.extract_strided_slice %186 {offsets = [0, 2, 0], sizes = [1, 16, 16], strides = [1, 1, 1]} : vector<1x18x18xf32> to vector<1x16x16xf32>
    %188 = arith.addf %163, %187 : vector<1x16x16xf32>
    %c0_140 = arith.constant 0 : index
    %c0_141 = arith.constant 0 : index
    %c0_142 = arith.constant 0 : index
    %c0_143 = arith.constant 0 : index
    %189 = vector.load %arg5[%c0_140, %c0_141, %c0_142, %c0_143] : memref<1x4x18x18xf32, #tpu.memory_space<vmem>>, vector<1x1x18x18xf32>
    %190 = vector.shape_cast %189 : vector<1x1x18x18xf32> to vector<1x18x18xf32>
    %c7 = arith.constant 7 : index
    %191 = memref.load %arg2[%c7] : memref<36xf32, #tpu.memory_space<smem>>
    %192 = vector.broadcast %191 : f32 to vector<1x18x18xf32>
    %193 = arith.mulf %190, %192 : vector<1x18x18xf32>
    %c0_144 = arith.constant 0 : index
    %c1_145 = arith.constant 1 : index
    %c0_146 = arith.constant 0 : index
    %c0_147 = arith.constant 0 : index
    %194 = vector.load %arg5[%c0_144, %c1_145, %c0_146, %c0_147] : memref<1x4x18x18xf32, #tpu.memory_space<vmem>>, vector<1x1x18x18xf32>
    %195 = vector.shape_cast %194 : vector<1x1x18x18xf32> to vector<1x18x18xf32>
    %c16 = arith.constant 16 : index
    %196 = memref.load %arg2[%c16] : memref<36xf32, #tpu.memory_space<smem>>
    %197 = vector.broadcast %196 : f32 to vector<1x18x18xf32>
    %198 = arith.mulf %195, %197 : vector<1x18x18xf32>
    %199 = arith.addf %193, %198 : vector<1x18x18xf32>
    %c0_148 = arith.constant 0 : index
    %c2_149 = arith.constant 2 : index
    %c0_150 = arith.constant 0 : index
    %c0_151 = arith.constant 0 : index
    %200 = vector.load %arg5[%c0_148, %c2_149, %c0_150, %c0_151] : memref<1x4x18x18xf32, #tpu.memory_space<vmem>>, vector<1x1x18x18xf32>
    %201 = vector.shape_cast %200 : vector<1x1x18x18xf32> to vector<1x18x18xf32>
    %c25 = arith.constant 25 : index
    %202 = memref.load %arg2[%c25] : memref<36xf32, #tpu.memory_space<smem>>
    %203 = vector.broadcast %202 : f32 to vector<1x18x18xf32>
    %204 = arith.mulf %201, %203 : vector<1x18x18xf32>
    %205 = arith.addf %199, %204 : vector<1x18x18xf32>
    %c0_152 = arith.constant 0 : index
    %c3_153 = arith.constant 3 : index
    %c0_154 = arith.constant 0 : index
    %c0_155 = arith.constant 0 : index
    %206 = vector.load %arg5[%c0_152, %c3_153, %c0_154, %c0_155] : memref<1x4x18x18xf32, #tpu.memory_space<vmem>>, vector<1x1x18x18xf32>
    %207 = vector.shape_cast %206 : vector<1x1x18x18xf32> to vector<1x18x18xf32>
    %c34 = arith.constant 34 : index
    %208 = memref.load %arg2[%c34] : memref<36xf32, #tpu.memory_space<smem>>
    %209 = vector.broadcast %208 : f32 to vector<1x18x18xf32>
    %210 = arith.mulf %207, %209 : vector<1x18x18xf32>
    %211 = arith.addf %205, %210 : vector<1x18x18xf32>
    %212 = vector.extract_strided_slice %211 {offsets = [0, 2, 1], sizes = [1, 16, 16], strides = [1, 1, 1]} : vector<1x18x18xf32> to vector<1x16x16xf32>
    %213 = arith.addf %188, %212 : vector<1x16x16xf32>
    %c0_156 = arith.constant 0 : index
    %c0_157 = arith.constant 0 : index
    %c0_158 = arith.constant 0 : index
    %c0_159 = arith.constant 0 : index
    %214 = vector.load %arg5[%c0_156, %c0_157, %c0_158, %c0_159] : memref<1x4x18x18xf32, #tpu.memory_space<vmem>>, vector<1x1x18x18xf32>
    %215 = vector.shape_cast %214 : vector<1x1x18x18xf32> to vector<1x18x18xf32>
    %c8 = arith.constant 8 : index
    %216 = memref.load %arg2[%c8] : memref<36xf32, #tpu.memory_space<smem>>
    %217 = vector.broadcast %216 : f32 to vector<1x18x18xf32>
    %218 = arith.mulf %215, %217 : vector<1x18x18xf32>
    %c0_160 = arith.constant 0 : index
    %c1_161 = arith.constant 1 : index
    %c0_162 = arith.constant 0 : index
    %c0_163 = arith.constant 0 : index
    %219 = vector.load %arg5[%c0_160, %c1_161, %c0_162, %c0_163] : memref<1x4x18x18xf32, #tpu.memory_space<vmem>>, vector<1x1x18x18xf32>
    %220 = vector.shape_cast %219 : vector<1x1x18x18xf32> to vector<1x18x18xf32>
    %c17_164 = arith.constant 17 : index
    %221 = memref.load %arg2[%c17_164] : memref<36xf32, #tpu.memory_space<smem>>
    %222 = vector.broadcast %221 : f32 to vector<1x18x18xf32>
    %223 = arith.mulf %220, %222 : vector<1x18x18xf32>
    %224 = arith.addf %218, %223 : vector<1x18x18xf32>
    %c0_165 = arith.constant 0 : index
    %c2_166 = arith.constant 2 : index
    %c0_167 = arith.constant 0 : index
    %c0_168 = arith.constant 0 : index
    %225 = vector.load %arg5[%c0_165, %c2_166, %c0_167, %c0_168] : memref<1x4x18x18xf32, #tpu.memory_space<vmem>>, vector<1x1x18x18xf32>
    %226 = vector.shape_cast %225 : vector<1x1x18x18xf32> to vector<1x18x18xf32>
    %c26 = arith.constant 26 : index
    %227 = memref.load %arg2[%c26] : memref<36xf32, #tpu.memory_space<smem>>
    %228 = vector.broadcast %227 : f32 to vector<1x18x18xf32>
    %229 = arith.mulf %226, %228 : vector<1x18x18xf32>
    %230 = arith.addf %224, %229 : vector<1x18x18xf32>
    %c0_169 = arith.constant 0 : index
    %c3_170 = arith.constant 3 : index
    %c0_171 = arith.constant 0 : index
    %c0_172 = arith.constant 0 : index
    %231 = vector.load %arg5[%c0_169, %c3_170, %c0_171, %c0_172] : memref<1x4x18x18xf32, #tpu.memory_space<vmem>>, vector<1x1x18x18xf32>
    %232 = vector.shape_cast %231 : vector<1x1x18x18xf32> to vector<1x18x18xf32>
    %c35 = arith.constant 35 : index
    %233 = memref.load %arg2[%c35] : memref<36xf32, #tpu.memory_space<smem>>
    %234 = vector.broadcast %233 : f32 to vector<1x18x18xf32>
    %235 = arith.mulf %232, %234 : vector<1x18x18xf32>
    %236 = arith.addf %230, %235 : vector<1x18x18xf32>
    %237 = vector.extract_strided_slice %236 {offsets = [0, 2, 2], sizes = [1, 16, 16], strides = [1, 1, 1]} : vector<1x18x18xf32> to vector<1x16x16xf32>
    %238 = arith.addf %213, %237 : vector<1x16x16xf32>
    %cst_173 = arith.constant 0.000000e+00 : f32
    %239 = vector.broadcast %cst_173 : f32 to vector<1x16x16xf32>
    %240 = arith.subf %239, %238 : vector<1x16x16xf32>
    %241 = math.exp %240 : vector<1x16x16xf32>
    %cst_174 = arith.constant 1.000000e+00 : f32
    %242 = vector.broadcast %cst_174 : f32 to vector<1x16x16xf32>
    %243 = arith.addf %242, %241 : vector<1x16x16xf32>
    %244 = tpu.reciprocal %243 {approx = true} : vector<1x16x16xf32> -> vector<1x16x16xf32>
    %245 = vector.shape_cast %244 : vector<1x16x16xf32> to vector<1x1x16x16xf32>
    %246 = vector.broadcast %245 : vector<1x1x16x16xf32> to vector<1x4x16x16xf32>
    %247 = arith.mulf %8, %246 : vector<1x4x16x16xf32>
    %c0_175 = arith.constant 0 : index
    %c0_176 = arith.constant 0 : index
    %c0_177 = arith.constant 0 : index
    %c0_178 = arith.constant 0 : index
    %248 = vector.load %arg4[%c0_175, %c0_176, %c0_177, %c0_178] : memref<1x4x16x16xf32, #tpu.memory_space<vmem>>, vector<1x4x16x16xf32>
    tpu.vector_store %arg4[%c0_175, %c0_176, %c0_177, %c0_178], %247 {strides = array<i32>} : memref<1x4x16x16xf32, #tpu.memory_space<vmem>>, vector<1x4x16x16xf32>,
    return
  }
  func.func @transform_0(%arg0: i32) -> (i32, i32, i32, i32) {
    %c0_i32 = arith.constant 0 : i32
    %c0_i32_0 = arith.constant 0 : i32
    %c0_i32_1 = arith.constant 0 : i32
    %c0_i32_2 = arith.constant 0 : i32
    return %arg0, %c0_i32, %c0_i32_0, %c0_i32_1 : i32, i32, i32, i32
  }
  func.func @transform_1(%arg0: i32) -> i32 {
    %c0_i32 = arith.constant 0 : i32
    %c0_i32_0 = arith.constant 0 : i32
    return %c0_i32 : i32
  }
  func.func @transform_2(%arg0: i32) -> i32 {
    %c0_i32 = arith.constant 0 : i32
    %c0_i32_0 = arith.constant 0 : i32
    return %c0_i32 : i32
  }
  func.func @transform_3(%arg0: i32) -> (i32, i32, i32, i32) {
    %c0_i32 = arith.constant 0 : i32
    %c0_i32_0 = arith.constant 0 : i32
    %c0_i32_1 = arith.constant 0 : i32
    %c0_i32_2 = arith.constant 0 : i32
    return %arg0, %c0_i32, %c0_i32_0, %c0_i32_1 : i32, i32, i32, i32
  }
}

</mosaic_0001>

<llo_original>
// kernel: tpu_custom_call.1
$region0: #{tpu_custom_call.1}
  #allocation0 [shape = 'u32[]', space=smem, size = 0x4, offset = 0x4, fixed_abs, tag = 'smem constant byte address 0x4 - core index']
  #allocation1 [shape = 'u32[144,128]{1,0:T(1,128)}', space=vmem, size = 0x12000, scoped, tag = 'internal scratch']
  #allocation2 [shape = 'f32[1,4,18,18]{3,2,1,0:T(8,128)}', space=vmem, size = 0xc000, scoped, tag = 'scratch operand']
  #allocation3 [shape = 'f32[1]{0:T(128)S(6)}', space=smem, size = 0x200, scoped, tag = 'scoped memory for tpu_custom_call.1']
  %s0 = inlined_call_operand.hbm [shape: f32[2,4,16,16], index: 0, kind: input, shape index: {}]
  %s1 = inlined_call_operand.vmem [shape: f32[36], index: 1, kind: input, shape index: {}]
  %s2 = inlined_call_operand.<no memory space> [shape: f32[1], index: 2, kind: input, shape index: {}]
  %s3 = inlined_call_operand.hbm [shape: f32[2,4,16,16], index: 3, kind: output, shape index: {}]
  %s4 = sld [smem:[#allocation0]]
  $region53: #{tpu_custom_call.1} parent=0
    _
  %s6 = ssub.s32 1, %s4
  %s7 = scalar_select 0, %s6, %s4
  %8 = sst [smem:[#allocation3]] %s2
  $region1: #{tpu_custom_call.1} parent=0
    #allocation4 [shape = 'u8[65536]{0}', space=vmem, size = 0x10000, scoped, tag = 'input window, operand 0']
    #allocation5 [shape = 's32[2]{0}', space=sflag, size = 0x8, scoped, tag = 'scoped memory for tpu_custom_call.1']
    #allocation6 [shape = 's32[2]{0}', space=sflag, size = 0x8, scoped, tag = 'scoped memory for tpu_custom_call.1']
    #allocation7 [shape = 's32[2]{0}', space=sflag, size = 0x8, scoped, tag = 'scoped memory for tpu_custom_call.1']
    #allocation8 [shape = 'u8[512]{0}', space=smem, size = 0x200, scoped, tag = 'input window, operand 1, single buffered']
    #allocation9 [shape = 'u8[65536]{0}', space=vmem, size = 0x10000, scoped, tag = 'output window, operand 0']
    %9 = vsyncpa [#allocation5], 0
    %s10 = scalar_lea.sflag [#allocation5], 1
    %11 = vsyncpa %s10, 0
    %12 = vsyncpa [#allocation7], 0
    %13 = vsyncpa [#allocation6], 0
    %s14 = scalar_lea.sflag [#allocation6], 1
    %15 = vsyncpa %s14, 0
    loop: start=0, step=1, limit=4
    $region2: #{tpu_custom_call.1} parent=1 // loop_pre_header
      _
    $region3: #{tpu_custom_call.1} parent=1 // loop_header
      %s17 = sphi 0, %s21
      %p18 = scmp.ge.s32.totalorder %s17, 4
      %s27 = sphi 0, %s29
      %s30 = sphi 0, %s27
      %s31 = sphi 0, %s30
      %s47 = sphi 0, %s31
      %s51 = sphi 0, %s51
      %s53 = sphi 0, %s51
      %s54 = sphi 0, %s53
      %s68 = sphi 0, %s54
      %s72 = sphi 0, %s72
      %s74 = sphi 0, %s72
      %s75 = sphi 0, %s74
      %s89 = sphi 0, %s75
      %s95 = sphi 0, %s97
      %s98 = sphi 0, %s95
      %s99 = sphi 0, %s98
      %s115 = sphi 0, %s99
    $region4: #{tpu_custom_call.1} parent=1 // loop_header_branch
      %20 = sbr.rel (%p18) target = $region8
    $region5: #{tpu_custom_call.1} parent=1 // loop_body
      %s22 = ssub.s32 %s17, 1
      %s23 = ssub.s32 %s17, 2
      %s24 = sadd.s32 %s17, 1
      %s25 = ssub.s32 %s17, %s24
      %p26 = scmp.eq.s32.totalorder %s25, 0
      %s28 = sadd.s32 %s27, 1
      %s29 = scalar_select %p26, %s27, %s28
      %p32 = pneg %p26
      %p33 = scmp.eq.s32.totalorder %s17, 1
      %p34 = por %p32, %p33
      %p35 = scmp.ne.s32.totalorder %s27, %s30
      %p36 = scmp.eq.s32.totalorder %s17, 0
      %p37 = por %p35, %p36
      %p38 = scmp.ne.s32.totalorder %s27, %s30
      %p39 = scmp.eq.s32.totalorder %s22, 1
      %p40 = por %p38, %p39
      %p41 = scmp.ne.s32.totalorder %s30, %s31
      %p42 = scmp.eq.s32.totalorder %s22, 0
      %p43 = por %p41, %p42
      %p44 = scmp.ne.s32.totalorder %s30, %s31
      %p45 = scmp.eq.s32.totalorder %s23, 1
      %p46 = por %p44, %p45
      %p48 = scmp.ne.s32.totalorder %s31, %s47
      %p49 = scmp.eq.s32.totalorder %s23, 0
      %p50 = por %p48, %p49
      %s52 = sadd.s32 %s51, 1
      %p55 = scmp.eq.s32.totalorder %s17, 1
      %p56 = scmp.ne.s32.totalorder %s51, %s53
      %p57 = scmp.eq.s32.totalorder %s17, 0
      %p58 = por %p56, %p57
      %p59 = scmp.ne.s32.totalorder %s51, %s53
      %p60 = scmp.eq.s32.totalorder %s22, 1
      %p61 = por %p59, %p60
      %p62 = scmp.ne.s32.totalorder %s53, %s54
      %p63 = scmp.eq.s32.totalorder %s22, 0
      %p64 = por %p62, %p63
      %p65 = scmp.ne.s32.totalorder %s53, %s54
      %p66 = scmp.eq.s32.totalorder %s23, 1
      %p67 = por %p65, %p66
      %p69 = scmp.ne.s32.totalorder %s54, %s68
      %p70 = scmp.eq.s32.totalorder %s23, 0
      %p71 = por %p69, %p70
      %s73 = sadd.s32 %s72, 1
      %p76 = scmp.eq.s32.totalorder %s17, 1
      %p77 = scmp.ne.s32.totalorder %s72, %s74
      %p78 = scmp.eq.s32.totalorder %s17, 0
      %p79 = por %p77, %p78
      %p80 = scmp.ne.s32.totalorder %s72, %s74
      %p81 = scmp.eq.s32.totalorder %s22, 1
      %p82 = por %p80, %p81
      %p83 = scmp.ne.s32.totalorder %s74, %s75
      %p84 = scmp.eq.s32.totalorder %s22, 0
      %p85 = por %p83, %p84
      %p86 = scmp.ne.s32.totalorder %s74, %s75
      %p87 = scmp.eq.s32.totalorder %s23, 1
      %p88 = por %p86, %p87
      %p90 = scmp.ne.s32.totalorder %s75, %s89
      %p91 = scmp.eq.s32.totalorder %s23, 0
      %p92 = por %p90, %p91
      %s93 = ssub.s32 %s17, %s24
      %p94 = scmp.eq.s32.totalorder %s93, 0
      %s96 = sadd.s32 %s95, 1
      %s97 = scalar_select %p94, %s95, %s96
      %p100 = pneg %p94
      %p101 = scmp.eq.s32.totalorder %s17, 1
      %p102 = por %p100, %p101
      %p103 = scmp.ne.s32.totalorder %s95, %s98
      %p104 = scmp.eq.s32.totalorder %s17, 0
      %p105 = por %p103, %p104
      %p106 = scmp.ne.s32.totalorder %s95, %s98
      %p107 = scmp.eq.s32.totalorder %s22, 1
      %p108 = por %p106, %p107
      %p109 = scmp.ne.s32.totalorder %s98, %s99
      %p110 = scmp.eq.s32.totalorder %s22, 0
      %p111 = por %p109, %p110
      %p112 = scmp.ne.s32.totalorder %s98, %s99
      %p113 = scmp.eq.s32.totalorder %s23, 1
      %p114 = por %p112, %p113
      %p116 = scmp.ne.s32.totalorder %s99, %s115
      %p117 = scmp.eq.s32.totalorder %s23, 0
      %p118 = por %p116, %p117
      %p119 = scmp.le.s32.totalorder 1, %s17
      %p120 = scmp.lt.s32.totalorder %s17, 3
      %p121 = pnand %p119, %p120
      %p122 = pneg %p121
      // Predicated region
      $region9: #{tpu_custom_call.1} parent=5 // pred_check
        _
      $region10: #{tpu_custom_call.1} parent=5 // pred_check_branch
        %124 = sbr.rel (%p121) target = $region12
      $region11: #{tpu_custom_call.1} parent=5 // pred_region
        %s125 = ssub.s32 %s17, 1
        // Predicated region
        $region13: #{tpu_custom_call.1} parent=11 // pred_check
          %p126 = pneg %p64
        $region14: #{tpu_custom_call.1} parent=11 // pred_check_branch
          %128 = sbr.rel (%p126) target = $region16
        $region15: #{tpu_custom_call.1} parent=11 // pred_region
          %s130 = ssub.s32 16, 16
          %131 = vsyncadd [#allocation7], %s130
          %s133 = sshll.u32 %s1, 4
          %s134 = int_to_ptr.vmem [resolvable:$true] %s133
          %136 = dma.vmem_to_smem %s134, 16, [#allocation8], [#allocation7]
        $region16: #{tpu_custom_call.1} parent=11 // pred_fallthru
          _
        // Predicated region
        $region17: #{tpu_custom_call.1} parent=11 // pred_check
          %p137 = pneg %p85
        $region18: #{tpu_custom_call.1} parent=11 // pred_check_branch
          %139 = sbr.rel (%p137) target = $region20
        $region19: #{tpu_custom_call.1} parent=11 // pred_region
          _
        $region20: #{tpu_custom_call.1} parent=11 // pred_fallthru
          _
      $region12: #{tpu_custom_call.1} parent=5 // pred_fallthru
        _
      %p140 = scmp.lt.s32.totalorder %s17, 2
      // Predicated region
      $region21: #{tpu_custom_call.1} parent=5 // pred_check
        %p141 = pneg %p140
      $region22: #{tpu_custom_call.1} parent=5 // pred_check_branch
        %143 = sbr.rel (%p141) target = $region24
      $region23: #{tpu_custom_call.1} parent=5 // pred_region
        // Predicated region
        $region25: #{tpu_custom_call.1} parent=23 // pred_check
          %p144 = pneg %p37
        $region26: #{tpu_custom_call.1} parent=23 // pred_check_branch
          %146 = sbr.rel (%p144) target = $region28
        $region27: #{tpu_custom_call.1} parent=23 // pred_region
          %s147 = sand.u32 %s27, 1
          %s148 = scalar_lea.sflag [#allocation5], %s147
          %s149 = sand.u32 %s27, 1
          %s150 = smul.addr %s149, 64
          %s151 = scalar_lea.vmem [#allocation4], %s150
          %s153 = ssub.s32 1024, 1024
          %154 = vsyncadd %s148, %s153
          %s155 = smul.addr %s17, 8
          %s156 = smul.addr %s155, 128
          %s157 = scalar_lea.hbm %s0, %s156
          %s158 = sshll.u32 %s151, 4
          %s159 = int_to_ptr.vmem [resolvable:$true] %s158
          %164 = dma.hbm_to_vmem [thread:$0]  %s157, 1024, %s159, %s148, 128, 128, 8
        $region28: #{tpu_custom_call.1} parent=23 // pred_fallthru
          _
      $region24: #{tpu_custom_call.1} parent=5 // pred_fallthru
        _
      %p165 = scmp.le.s32.totalorder 1, %s17
      %p166 = scmp.lt.s32.totalorder %s17, 3
      %p167 = pnand %p165, %p166
      %p168 = pneg %p167
      // Predicated region
      $region29: #{tpu_custom_call.1} parent=5 // pred_check
        _
      $region30: #{tpu_custom_call.1} parent=5 // pred_check_branch
        %170 = sbr.rel (%p167) target = $region32
      $region31: #{tpu_custom_call.1} parent=5 // pred_region
        %s171 = ssub.s32 %s17, 1
        %s172 = sand.u32 %s30, 1
        %s173 = scalar_lea.sflag [#allocation5], %s172
        %s174 = sand.u32 %s30, 1
        %s175 = smul.addr %s174, 64
        %s176 = scalar_lea.vmem [#allocation4], %s175
        // Predicated region
        $region33: #{tpu_custom_call.1} parent=31 // pred_check
          %p177 = pneg %p43
        $region34: #{tpu_custom_call.1} parent=31 // pred_check_branch
          %179 = sbr.rel (%p177) target = $region36
        $region35: #{tpu_custom_call.1} parent=31 // pred_region
          %180 = dma.done %s173, 1024
        $region36: #{tpu_custom_call.1} parent=31 // pred_fallthru
          _
        // Predicated region
        $region37: #{tpu_custom_call.1} parent=31 // pred_check
          %p181 = pneg %p64
        $region38: #{tpu_custom_call.1} parent=31 // pred_check_branch
          %183 = sbr.rel (%p181) target = $region40
        $region39: #{tpu_custom_call.1} parent=31 // pred_region
          %184 = dma.done [#allocation7], 16
        $region40: #{tpu_custom_call.1} parent=31 // pred_fallthru
          _
        %185 = sfence
        %s186 = sand.u32 %s30, 1
        %s187 = scalar_lea.sflag [#allocation5], %s186
        %s188 = sand.u32 %s30, 1
        %s189 = smul.addr %s188, 64
        %s190 = scalar_lea.vmem [#allocation4], %s189
        %p191 = pneg %p43
        %p192 = pneg %p40
        %p193 = pneg %p64
        %p194 = pneg %p61
        %p195 = pneg %p85
        %p196 = pneg %p82
        %p197 = pneg %p111
        %p198 = pneg %p108
        %s199 = sand.u32 %s98, 1
        %s200 = scalar_lea.sflag [#allocation6], %s199
        %s201 = sand.u32 %s98, 1
        %s202 = smul.addr %s201, 64
        %s203 = scalar_lea.vmem [#allocation9], %s202
        %vm204 = vcmask 139264
        %205 = vst.msk [vmem:[#allocation2] sm:$0x1] %vm204, 0.0
        %206 = vst.msk [vmem:[#allocation2 + $0x18] sm:$0x1] %vm204, 0.0
        %207 = vst.msk [vmem:[#allocation2 + $0x30] sm:$0x1] %vm204, 0.0
        %208 = vst.msk [vmem:[#allocation2 + $0x48] sm:$0x1] %vm204, 0.0
        %209 = vst.msk [vmem:[#allocation2 + $0x11] sm:$0x1] %vm204, 0.0
        %210 = vst.msk [vmem:[#allocation2 + $0x29] sm:$0x1] %vm204, 0.0
        %211 = vst.msk [vmem:[#allocation2 + $0x41] sm:$0x1] %vm204, 0.0
        %212 = vst.msk [vmem:[#allocation2 + $0x59] sm:$0x1] %vm204, 0.0
        %vm213 = vcmask 7168
        %214 = vst.msk [vmem:[#allocation2] sm:$0xff] %vm213, 0.0
        %215 = vst.msk [vmem:[#allocation2 + $0x8] sm:$0xff] %vm213, 0.0
        %vm216 = vcmask 1024
        %217 = vst.msk [vmem:[#allocation2 + $0x10] sm:$0x3] %vm216, 0.0
        %218 = vst.msk [vmem:[#allocation2 + $0x18] sm:$0xff] %vm213, 0.0
        %219 = vst.msk [vmem:[#allocation2 + $0x20] sm:$0xff] %vm213, 0.0
        %220 = vst.msk [vmem:[#allocation2 + $0x28] sm:$0x3] %vm216, 0.0
        %221 = vst.msk [vmem:[#allocation2 + $0x30] sm:$0xff] %vm213, 0.0
        %222 = vst.msk [vmem:[#allocation2 + $0x38] sm:$0xff] %vm213, 0.0
        %223 = vst.msk [vmem:[#allocation2 + $0x40] sm:$0x3] %vm216, 0.0
        %224 = vst.msk [vmem:[#allocation2 + $0x48] sm:$0xff] %vm213, 0.0
        %225 = vst.msk [vmem:[#allocation2 + $0x50] sm:$0xff] %vm213, 0.0
        %226 = vst.msk [vmem:[#allocation2 + $0x58] sm:$0x3] %vm216, 0.0
        %vm227 = vcmask 146568
        %228 = vst.msk [vmem:[#allocation2] sm:$0xff] %vm227, 0.0
        %229 = vst.msk [vmem:[#allocation2 + $0x8] sm:$0xff] %vm227, 0.0
        %vm230 = vcmask 140424
        %231 = vst.msk [vmem:[#allocation2 + $0x10] sm:$0x3] %vm230, 0.0
        %232 = vst.msk [vmem:[#allocation2 + $0x18] sm:$0xff] %vm227, 0.0
        %233 = vst.msk [vmem:[#allocation2 + $0x20] sm:$0xff] %vm227, 0.0
        %234 = vst.msk [vmem:[#allocation2 + $0x28] sm:$0x3] %vm230, 0.0
        %235 = vst.msk [vmem:[#allocation2 + $0x30] sm:$0xff] %vm227, 0.0
        %236 = vst.msk [vmem:[#allocation2 + $0x38] sm:$0xff] %vm227, 0.0
        %237 = vst.msk [vmem:[#allocation2 + $0x40] sm:$0x3] %vm230, 0.0
        %238 = vst.msk [vmem:[#allocation2 + $0x48] sm:$0xff] %vm227, 0.0
        %239 = vst.msk [vmem:[#allocation2 + $0x50] sm:$0xff] %vm227, 0.0
        %240 = vst.msk [vmem:[#allocation2 + $0x58] sm:$0x3] %vm230, 0.0
        %v241 = vld [vmem:[%s176] sm:$0xff]
        %v242 = vld [vmem:[%s176 + $0x8] sm:$0xff]
        %v243 = vld [vmem:[%s176 + $0x10] sm:$0xff]
        %v244 = vld [vmem:[%s176 + $0x18] sm:$0xff]
        %v245 = vld [vmem:[%s176 + $0x20] sm:$0xff]
        %v246 = vld [vmem:[%s176 + $0x28] sm:$0xff]
        %v247 = vld [vmem:[%s176 + $0x30] sm:$0xff]
        %v248 = vld [vmem:[%s176 + $0x38] sm:$0xff]
        %257 = vrot.lane.b32.xlu0 %v241, 1
        %v258 = vpop.permute.xlu0 %257
        %259 = vrot.lane.b32.xlu0 %v242, 1
        %v260 = vpop.permute.xlu0 %259
        %261 = vrot.lane.b32.xlu0 %v243, 1
        %v262 = vpop.permute.xlu0 %261
        %263 = vrot.lane.b32.xlu0 %v244, 1
        %v264 = vpop.permute.xlu0 %263
        %265 = vrot.lane.b32.xlu0 %v245, 1
        %v266 = vpop.permute.xlu0 %265
        %267 = vrot.lane.b32.xlu0 %v246, 1
        %v268 = vpop.permute.xlu0 %267
        %269 = vrot.lane.b32.xlu0 %v247, 1
        %v270 = vpop.permute.xlu0 %269
        %271 = vrot.lane.b32.xlu0 %v248, 1
        %v272 = vpop.permute.xlu0 %271
        %vm281 = vcmask 138248
        %282 = vst.msk [vmem:[#allocation2 + $0x1] sm:$0xff] %vm281, %v258
        %283 = vst.msk [vmem:[#allocation2 + $0x9] sm:$0xff] %vm281, %v260
        %284 = vst.msk [vmem:[#allocation2 + $0x19] sm:$0xff] %vm281, %v262
        %285 = vst.msk [vmem:[#allocation2 + $0x21] sm:$0xff] %vm281, %v264
        %286 = vst.msk [vmem:[#allocation2 + $0x31] sm:$0xff] %vm281, %v266
        %287 = vst.msk [vmem:[#allocation2 + $0x39] sm:$0xff] %vm281, %v268
        %288 = vst.msk [vmem:[#allocation2 + $0x49] sm:$0xff] %vm281, %v270
        %289 = vst.msk [vmem:[#allocation2 + $0x51] sm:$0xff] %vm281, %v272
        %s290 = sld [smem:[#allocation3]]
        %v291 = vstv %s290
        %v292 = vadd.f32 %v291, 0.0
        %v293 = vld [vmem:[#allocation2] sm:$0xff]
        %v294 = vld [vmem:[#allocation2 + $0x8] sm:$0xff]
        %v295 = vld [vmem:[#allocation2 + $0x10] sm:$0x3]
        %s296 = sld [smem:[#allocation8]]
        %v297 = vstv %s296
        %v298 = vmul.f32 %v293, %v297
        %v299 = vmul.f32 %v294, %v297
        %s300 = scalar_lea.vmem [#allocation2], 24
        %v301 = vld [vmem:[%s300] sm:$0xff]
        %v302 = vld [vmem:[%s300 + $0x8] sm:$0xff]
        %v303 = vld [vmem:[%s300 + $0x10] sm:$0x3]
        %s304 = sld [smem:[#allocation8 + $0x9]]
        %v305 = vstv %s304
        %v306 = vmul.f32 %v301, %v305
        %v307 = vmul.f32 %v302, %v305
        %v308 = vadd.f32 %v298, %v306
        %v309 = vadd.f32 %v299, %v307
        %s310 = scalar_lea.vmem [#allocation2], 48
        %v311 = vld [vmem:[%s310] sm:$0xff]
        %v312 = vld [vmem:[%s310 + $0x8] sm:$0xff]
        %v313 = vld [vmem:[%s310 + $0x10] sm:$0x3]
        %s314 = sld [smem:[#allocation8 + $0x12]]
        %v315 = vstv %s314
        %v316 = vmul.f32 %v311, %v315
        %v317 = vmul.f32 %v312, %v315
        %v318 = vadd.f32 %v308, %v316
        %v319 = vadd.f32 %v309, %v317
        %s320 = scalar_lea.vmem [#allocation2], 72
        %v321 = vld [vmem:[%s320] sm:$0xff]
        %v322 = vld [vmem:[%s320 + $0x8] sm:$0xff]
        %v323 = vld [vmem:[%s320 + $0x10] sm:$0x3]
        %s324 = sld [smem:[#allocation8 + $0x1b]]
        %v325 = vstv %s324
        %v326 = vmul.f32 %v321, %v325
        %v327 = vmul.f32 %v322, %v325
        %v328 = vadd.f32 %v318, %v326
        %v329 = vadd.f32 %v319, %v327
        %v330 = vadd.f32 %v292, %v328
        %v331 = vadd.f32 %v292, %v329
        %s332 = sld [smem:[#allocation8 + $0x1]]
        %v333 = vstv %s332
        %v334 = vmul.f32 %v293, %v333
        %v335 = vmul.f32 %v294, %v333
        %s336 = sld [smem:[#allocation8 + $0xa]]
        %v337 = vstv %s336
        %v338 = vmul.f32 %v301, %v337
        %v339 = vmul.f32 %v302, %v337
        %v340 = vadd.f32 %v334, %v338
        %v341 = vadd.f32 %v335, %v339
        %s342 = sld [smem:[#allocation8 + $0x13]]
        %v343 = vstv %s342
        %v344 = vmul.f32 %v311, %v343
        %v345 = vmul.f32 %v312, %v343
        %v346 = vadd.f32 %v340, %v344
        %v347 = vadd.f32 %v341, %v345
        %s348 = sld [smem:[#allocation8 + $0x1c]]
        %v349 = vstv %s348
        %v350 = vmul.f32 %v321, %v349
        %v351 = vmul.f32 %v322, %v349
        %v352 = vadd.f32 %v346, %v350
        %v353 = vadd.f32 %v347, %v351
        %356 = vrot.lane.b32.xlu0 %v352, 127
        %v357 = vpop.permute.xlu0 %356
        %358 = vrot.lane.b32.xlu0 %v353, 127
        %v359 = vpop.permute.xlu0 %358
        %v362 = vadd.f32 %v330, %v357
        %v363 = vadd.f32 %v331, %v359
        %s364 = sld [smem:[#allocation8 + $0x2]]
        %v365 = vstv %s364
        %v366 = vmul.f32 %v293, %v365
        %v367 = vmul.f32 %v294, %v365
        %s368 = sld [smem:[#allocation8 + $0xb]]
        %v369 = vstv %s368
        %v370 = vmul.f32 %v301, %v369
        %v371 = vmul.f32 %v302, %v369
        %v372 = vadd.f32 %v366, %v370
        %v373 = vadd.f32 %v367, %v371
        %s374 = sld [smem:[#allocation8 + $0x14]]
        %v375 = vstv %s374
        %v376 = vmul.f32 %v311, %v375
        %v377 = vmul.f32 %v312, %v375
        %v378 = vadd.f32 %v372, %v376
        %v379 = vadd.f32 %v373, %v377
        %s380 = sld [smem:[#allocation8 + $0x1d]]
        %v381 = vstv %s380
        %v382 = vmul.f32 %v321, %v381
        %v383 = vmul.f32 %v322, %v381
        %v384 = vadd.f32 %v378, %v382
        %v385 = vadd.f32 %v379, %v383
        %388 = vrot.lane.b32.xlu0 %v384, 126
        %v389 = vpop.permute.xlu0 %388
        %390 = vrot.lane.b32.xlu0 %v385, 126
        %v391 = vpop.permute.xlu0 %390
        %v394 = vadd.f32 %v362, %v389
        %v395 = vadd.f32 %v363, %v391
        %s396 = sld [smem:[#allocation8 + $0x3]]
        %v397 = vstv %s396
        %v398 = vmul.f32 %v293, %v397
        %v399 = vmul.f32 %v294, %v397
        %v400 = vmul.f32 %v295, %v397
        %s401 = sld [smem:[#allocation8 + $0xc]]
        %v402 = vstv %s401
        %v403 = vmul.f32 %v301, %v402
        %v404 = vmul.f32 %v302, %v402
        %v405 = vmul.f32 %v303, %v402
        %v406 = vadd.f32 %v398, %v403
        %v407 = vadd.f32 %v399, %v404
        %v408 = vadd.f32 %v400, %v405
        %s409 = sld [smem:[#allocation8 + $0x15]]
        %v410 = vstv %s409
        %v411 = vmul.f32 %v311, %v410
        %v412 = vmul.f32 %v312, %v410
        %v413 = vmul.f32 %v313, %v410
        %v414 = vadd.f32 %v406, %v411
        %v415 = vadd.f32 %v407, %v412
        %v416 = vadd.f32 %v408, %v413
        %s417 = sld [smem:[#allocation8 + $0x1e]]
        %v418 = vstv %s417
        %v419 = vmul.f32 %v321, %v418
        %v420 = vmul.f32 %v322, %v418
        %v421 = vmul.f32 %v323, %v418
        %v422 = vadd.f32 %v414, %v419
        %v423 = vadd.f32 %v415, %v420
        %v424 = vadd.f32 %v416, %v421
        %vm428 = vcmask 1046528
        %v429 = vrot.slane %v422, 1
        %v430 = vrot.slane %v423, 1
        %v431 = vsel %vm428, %v429, %v430
        %v432 = vrot.slane %v424, 1
        %v433 = vsel %vm428, %v430, %v432
        %v436 = vadd.f32 %v394, %v431
        %v437 = vadd.f32 %v395, %v433
        %s438 = sld [smem:[#allocation8 + $0x4]]
        %v439 = vstv %s438
        %v440 = vmul.f32 %v293, %v439
        %v441 = vmul.f32 %v294, %v439
        %v442 = vmul.f32 %v295, %v439
        %s443 = sld [smem:[#allocation8 + $0xd]]
        %v444 = vstv %s443
        %v445 = vmul.f32 %v301, %v444
        %v446 = vmul.f32 %v302, %v444
        %v447 = vmul.f32 %v303, %v444
        %v448 = vadd.f32 %v440, %v445
        %v449 = vadd.f32 %v441, %v446
        %v450 = vadd.f32 %v442, %v447
        %s451 = sld [smem:[#allocation8 + $0x16]]
        %v452 = vstv %s451
        %v453 = vmul.f32 %v311, %v452
        %v454 = vmul.f32 %v312, %v452
        %v455 = vmul.f32 %v313, %v452
        %v456 = vadd.f32 %v448, %v453
        %v457 = vadd.f32 %v449, %v454
        %v458 = vadd.f32 %v450, %v455
        %s459 = sld [smem:[#allocation8 + $0x1f]]
        %v460 = vstv %s459
        %v461 = vmul.f32 %v321, %v460
        %v462 = vmul.f32 %v322, %v460
        %v463 = vmul.f32 %v323, %v460
        %v464 = vadd.f32 %v456, %v461
        %v465 = vadd.f32 %v457, %v462
        %v466 = vadd.f32 %v458, %v463
        %v470 = vrot.slane %v464, 1
        %v471 = vrot.slane %v465, 1
        %v472 = vsel %vm428, %v470, %v471
        %v473 = vrot.slane %v466, 1
        %v474 = vsel %vm428, %v471, %v473
        %475 = vrot.lane.b32.xlu0 %v472, 127
        %v476 = vpop.permute.xlu0 %475
        %477 = vrot.lane.b32.xlu0 %v474, 127
        %v478 = vpop.permute.xlu0 %477
        %v481 = vadd.f32 %v436, %v476
        %v482 = vadd.f32 %v437, %v478
        %s483 = sld [smem:[#allocation8 + $0x5]]
        %v484 = vstv %s483
        %v485 = vmul.f32 %v293, %v484
        %v486 = vmul.f32 %v294, %v484
        %v487 = vmul.f32 %v295, %v484
        %s488 = sld [smem:[#allocation8 + $0xe]]
        %v489 = vstv %s488
        %v490 = vmul.f32 %v301, %v489
        %v491 = vmul.f32 %v302, %v489
        %v492 = vmul.f32 %v303, %v489
        %v493 = vadd.f32 %v485, %v490
        %v494 = vadd.f32 %v486, %v491
        %v495 = vadd.f32 %v487, %v492
        %s496 = sld [smem:[#allocation8 + $0x17]]
        %v497 = vstv %s496
        %v498 = vmul.f32 %v311, %v497
        %v499 = vmul.f32 %v312, %v497
        %v500 = vmul.f32 %v313, %v497
        %v501 = vadd.f32 %v493, %v498
        %v502 = vadd.f32 %v494, %v499
        %v503 = vadd.f32 %v495, %v500
        %s504 = sld [smem:[#allocation8 + $0x20]]
        %v505 = vstv %s504
        %v506 = vmul.f32 %v321, %v505
        %v507 = vmul.f32 %v322, %v505
        %v508 = vmul.f32 %v323, %v505
        %v509 = vadd.f32 %v501, %v506
        %v510 = vadd.f32 %v502, %v507
        %v511 = vadd.f32 %v503, %v508
        %v515 = vrot.slane %v509, 1
        %v516 = vrot.slane %v510, 1
        %v517 = vsel %vm428, %v515, %v516
        %v518 = vrot.slane %v511, 1
        %v519 = vsel %vm428, %v516, %v518
        %520 = vrot.lane.b32.xlu0 %v517, 126
        %v521 = vpop.permute.xlu0 %520
        %522 = vrot.lane.b32.xlu0 %v519, 126
        %v523 = vpop.permute.xlu0 %522
        %v526 = vadd.f32 %v481, %v521
        %v527 = vadd.f32 %v482, %v523
        %s528 = sld [smem:[#allocation8 + $0x6]]
        %v529 = vstv %s528
        %v530 = vmul.f32 %v293, %v529
        %v531 = vmul.f32 %v294, %v529
        %v532 = vmul.f32 %v295, %v529
        %s533 = sld [smem:[#allocation8 + $0xf]]
        %v534 = vstv %s533
        %v535 = vmul.f32 %v301, %v534
        %v536 = vmul.f32 %v302, %v534
        %v537 = vmul.f32 %v303, %v534
        %v538 = vadd.f32 %v530, %v535
        %v539 = vadd.f32 %v531, %v536
        %v540 = vadd.f32 %v532, %v537
        %s541 = sld [smem:[#allocation8 + $0x18]]
        %v542 = vstv %s541
        %v543 = vmul.f32 %v311, %v542
        %v544 = vmul.f32 %v312, %v542
        %v545 = vmul.f32 %v313, %v542
        %v546 = vadd.f32 %v538, %v543
        %v547 = vadd.f32 %v539, %v544
        %v548 = vadd.f32 %v540, %v545
        %s549 = sld [smem:[#allocation8 + $0x21]]
        %v550 = vstv %s549
        %v551 = vmul.f32 %v321, %v550
        %v552 = vmul.f32 %v322, %v550
        %v553 = vmul.f32 %v323, %v550
        %v554 = vadd.f32 %v546, %v551
        %v555 = vadd.f32 %v547, %v552
        %v556 = vadd.f32 %v548, %v553
        %vm560 = vcmask 1045504
        %v561 = vrot.slane %v554, 2
        %v562 = vrot.slane %v555, 2
        %v563 = vsel %vm560, %v561, %v562
        %v564 = vrot.slane %v556, 2
        %v565 = vsel %vm560, %v562, %v564
        %v568 = vadd.f32 %v526, %v563
        %v569 = vadd.f32 %v527, %v565
        %s570 = sld [smem:[#allocation8 + $0x7]]
        %v571 = vstv %s570
        %v572 = vmul.f32 %v293, %v571
        %v573 = vmul.f32 %v294, %v571
        %v574 = vmul.f32 %v295, %v571
        %s575 = sld [smem:[#allocation8 + $0x10]]
        %v576 = vstv %s575
        %v577 = vmul.f32 %v301, %v576
        %v578 = vmul.f32 %v302, %v576
        %v579 = vmul.f32 %v303, %v576
        %v580 = vadd.f32 %v572, %v577
        %v581 = vadd.f32 %v573, %v578
        %v582 = vadd.f32 %v574, %v579
        %s583 = sld [smem:[#allocation8 + $0x19]]
        %v584 = vstv %s583
        %v585 = vmul.f32 %v311, %v584
        %v586 = vmul.f32 %v312, %v584
        %v587 = vmul.f32 %v313, %v584
        %v588 = vadd.f32 %v580, %v585
        %v589 = vadd.f32 %v581, %v586
        %v590 = vadd.f32 %v582, %v587
        %s591 = sld [smem:[#allocation8 + $0x22]]
        %v592 = vstv %s591
        %v593 = vmul.f32 %v321, %v592
        %v594 = vmul.f32 %v322, %v592
        %v595 = vmul.f32 %v323, %v592
        %v596 = vadd.f32 %v588, %v593
        %v597 = vadd.f32 %v589, %v594
        %v598 = vadd.f32 %v590, %v595
        %v602 = vrot.slane %v596, 2
        %v603 = vrot.slane %v597, 2
        %v604 = vsel %vm560, %v602, %v603
        %v605 = vrot.slane %v598, 2
        %v606 = vsel %vm560, %v603, %v605
        %607 = vrot.lane.b32.xlu0 %v604, 127
        %v608 = vpop.permute.xlu0 %607
        %609 = vrot.lane.b32.xlu0 %v606, 127
        %v610 = vpop.permute.xlu0 %609
        %v613 = vadd.f32 %v568, %v608
        %v614 = vadd.f32 %v569, %v610
        %s615 = sld [smem:[#allocation8 + $0x8]]
        %v616 = vstv %s615
        %v617 = vmul.f32 %v293, %v616
        %v618 = vmul.f32 %v294, %v616
        %v619 = vmul.f32 %v295, %v616
        %s620 = sld [smem:[#allocation8 + $0x11]]
        %v621 = vstv %s620
        %v622 = vmul.f32 %v301, %v621
        %v623 = vmul.f32 %v302, %v621
        %v624 = vmul.f32 %v303, %v621
        %v625 = vadd.f32 %v617, %v622
        %v626 = vadd.f32 %v618, %v623
        %v627 = vadd.f32 %v619, %v624
        %s628 = sld [smem:[#allocation8 + $0x1a]]
        %v629 = vstv %s628
        %v630 = vmul.f32 %v311, %v629
        %v631 = vmul.f32 %v312, %v629
        %v632 = vmul.f32 %v313, %v629
        %v633 = vadd.f32 %v625, %v630
        %v634 = vadd.f32 %v626, %v631
        %v635 = vadd.f32 %v627, %v632
        %s636 = sld [smem:[#allocation8 + $0x23]]
        %v637 = vstv %s636
        %v638 = vmul.f32 %v321, %v637
        %v639 = vmul.f32 %v322, %v637
        %v640 = vmul.f32 %v323, %v637
        %v641 = vadd.f32 %v633, %v638
        %v642 = vadd.f32 %v634, %v639
        %v643 = vadd.f32 %v635, %v640
        %v647 = vrot.slane %v641, 2
        %v648 = vrot.slane %v642, 2
        %v649 = vsel %vm560, %v647, %v648
        %v650 = vrot.slane %v643, 2
        %v651 = vsel %vm560, %v648, %v650
        %652 = vrot.lane.b32.xlu0 %v649, 126
        %v653 = vpop.permute.xlu0 %652
        %654 = vrot.lane.b32.xlu0 %v651, 126
        %v655 = vpop.permute.xlu0 %654
        %v658 = vadd.f32 %v613, %v653
        %v659 = vadd.f32 %v614, %v655
        %v660 = vsub.f32 0.0, %v658
        %v661 = vsub.f32 0.0, %v659
        %v662 = vmul.f32 %v660, 1.442695
        %v663 = vpow.pop %v662
        %v664 = vmul.f32 %v661, 1.442695
        %v665 = vpow.pop %v664
        %v666 = vadd.f32 %v663, 1.0
        %v667 = vadd.f32 %v665, 1.0
        %v668 = vrcp.pop %v666
        %v669 = vrcp.pop %v667
        %v670 = vmul.f32 %v241, %v668
        %v671 = vmul.f32 %v242, %v669
        %v672 = vmul.f32 %v243, %v668
        %v673 = vmul.f32 %v244, %v669
        %v674 = vmul.f32 %v245, %v668
        %v675 = vmul.f32 %v246, %v669
        %v676 = vmul.f32 %v247, %v668
        %v677 = vmul.f32 %v248, %v669
        %vm678 = vcmask 130048
        %679 = vst.msk [vmem:[%s203] sm:$0xff] %vm678, %v670
        %680 = vst.msk [vmem:[%s203 + $0x8] sm:$0xff] %vm678, %v671
        %681 = vst.msk [vmem:[%s203 + $0x10] sm:$0xff] %vm678, %v672
        %682 = vst.msk [vmem:[%s203 + $0x18] sm:$0xff] %vm678, %v673
        %683 = vst.msk [vmem:[%s203 + $0x20] sm:$0xff] %vm678, %v674
        %684 = vst.msk [vmem:[%s203 + $0x28] sm:$0xff] %vm678, %v675
        %685 = vst.msk [vmem:[%s203 + $0x30] sm:$0xff] %vm678, %v676
        %686 = vst.msk [vmem:[%s203 + $0x38] sm:$0xff] %vm678, %v677
        %s687 = sand.u32 %s98, 1
        %s688 = scalar_lea.sflag [#allocation6], %s687
        %s689 = sand.u32 %s98, 1
        %s690 = smul.addr %s689, 64
        %s691 = scalar_lea.vmem [#allocation9], %s690
        // Predicated region
        $region41: #{tpu_custom_call.1} parent=31 // pred_check
          %p692 = pneg %p108
        $region42: #{tpu_custom_call.1} parent=31 // pred_check_branch
          %694 = sbr.rel (%p692) target = $region44
        $region43: #{tpu_custom_call.1} parent=31 // pred_region
          %s696 = ssub.s32 1024, 1024
          %697 = vsyncadd %s688, %s696
          %s698 = smul.addr %s22, 8
          %s699 = smul.addr %s698, 128
          %s700 = scalar_lea.hbm %s3, %s699
          %s701 = sshll.u32 %s691, 4
          %s702 = int_to_ptr.vmem [resolvable:$true] %s701
          %707 = dma.vmem_to_hbm [thread:$0]  %s702, 1024, %s700, %s688, 128, 128, 8
        $region44: #{tpu_custom_call.1} parent=31 // pred_fallthru
          _
      $region32: #{tpu_custom_call.1} parent=5 // pred_fallthru
        _
      %p708 = scmp.le.s32.totalorder 2, %s17
      // Predicated region
      $region45: #{tpu_custom_call.1} parent=5 // pred_check
        %p709 = pneg %p708
      $region46: #{tpu_custom_call.1} parent=5 // pred_check_branch
        %711 = sbr.rel (%p709) target = $region48
      $region47: #{tpu_custom_call.1} parent=5 // pred_region
        %s712 = ssub.s32 %s17, 2
        // Predicated region
        $region49: #{tpu_custom_call.1} parent=47 // pred_check
          %p713 = pneg %p114
        $region50: #{tpu_custom_call.1} parent=47 // pred_check_branch
          %715 = sbr.rel (%p713) target = $region52
        $region51: #{tpu_custom_call.1} parent=47 // pred_region
          %s716 = sand.u32 %s99, 1
          %s717 = scalar_lea.sflag [#allocation6], %s716
          %s718 = sand.u32 %s99, 1
          %s719 = smul.addr %s718, 64
          %s720 = scalar_lea.vmem [#allocation9], %s719
          %721 = dma.done %s717, 1024
        $region52: #{tpu_custom_call.1} parent=47 // pred_fallthru
          _
      $region48: #{tpu_custom_call.1} parent=5 // pred_fallthru
        _
    $region6: #{tpu_custom_call.1} parent=1 // loop_footer
      %s21 = sadd.s32 1, %s17
    $region7: #{tpu_custom_call.1} parent=1 // loop_footer_branch
      %16 = sbr.rel target = $region3
    $region8: #{tpu_custom_call.1} parent=1 // loop_exit
      _
    %722 = vsyncpa [#allocation5], 1
    %s723 = scalar_lea.sflag [#allocation5], 1
    %724 = vsyncpa %s723, 1
    %725 = vsyncpa [#allocation6], 1
    %s726 = scalar_lea.sflag [#allocation6], 1
    %727 = vsyncpa %s726, 1
    %728 = vsyncpa [#allocation7], 1
    %s729 = scalar_lea.sflag [#allocation7], 1
    %730 = vsyncpa %s729, 1

</llo_original>
